<compile_context>
chip_gen: v6e
topology: v6e:2x2x1
jax: 0.10.0
libtpu: 0.0.40
codegen_flags: <defaults>
</compile_context>

<pallas_src>
import numpy as np
import jax
import jax.numpy as jnp
from jax.experimental import pallas as pl
from jax.experimental.pallas import tpu as pltpu

# ----------------------------- model constants -----------------------------
H_IMG, W_IMG = 32, 32          # image spatial size
C_IN = 3                       # image channels
PATCH = 8                      # VAE downsample factor (SD uses 8)
C_LAT = 4                      # latent channels (SD uses 4)
H_LAT, W_LAT = H_IMG // PATCH, W_IMG // PATCH
LAT_FLAT = C_LAT * H_LAT * W_LAT            # 64
TEMB_DIM = 32                  # timestep embedding dim
TXT_DIM = 32                   # text-embedding hidden size (stand-in for CLIP 768)
SEQ_LEN = 8                    # text sequence length (stand-in for 77)
UNET_HID = 64                  # hidden width of the stand-in UNet
SCALING_FACTOR = 0.18215       # vae.config.scaling_factor
TRAIN_TIMESTEPS = 1000

LANE = 128                     # TPU lane width
FEAT_DIM = LAT_FLAT + TEMB_DIM + TXT_DIM    # 128 (lane aligned)
HID_PAD = 128                  # UNET_HID padded to lane width
PATCH_FEAT = C_IN * PATCH * PATCH           # 192
DEC_PAD = 256                  # 192 padded up to a multiple of 128
assert FEAT_DIM == LANE


# ------------------------------ Pallas kernels ------------------------------
def _encode_matmul_kernel(x_ref, w_ref, b_ref, o_ref):
    # (M, K) @ (K, 128) + (1, 128); lane-dense output, sliced in the wrapper.
    o_ref[...] = (
        jnp.dot(x_ref[...], w_ref[...], preferred_element_type=jnp.float32)
        + b_ref[...]
    )


def _decode_dire_kernel(lat_ref, w_ref, b_ref, x_ref, recon_ref, dire_ref):
    # Fused decoder matmul + tanh + DIRE abs-diff (all in patch-row layout).
    recon = jnp.tanh(
        jnp.dot(lat_ref[...], w_ref[...], preferred_element_type=jnp.float32)
        + b_ref[...]
    )
    recon_ref[...] = recon
    dire_ref[...] = jnp.abs(x_ref[...] - recon)


def _diffusion_loop_kernel(coef_ref, lat0_ref, extras_ref, w1_ref, b1_ref,
                           w2_ref, b2_ref, lat_out_ref, latdiff_ref, lat_sc):
    """One grid step = one DDIM step (inversion steps first, then sampling).

    coef_ref (SMEM, 1-D, 4 per step):
      [1/sqrt(alpha_t), sqrt(1-alpha_t), sqrt(alpha_tgt), sqrt(1-alpha_tgt)]
    lat_sc  : (B_PAD, 128) latent state; lanes [0,64) hold the latent, the
              rest stay exactly zero by construction.
    extras  : (1, B_PAD, 128) per-step [zeros(64) | temb(32) | txt(32)].
    """
    s = pl.program_id(0)
    last = pl.num_programs(0) - 1

    @pl.when(s == 0)
    def _():
        lat_sc[...] = lat0_ref[...]

    lat = lat_sc[...]
    feat = lat + extras_ref[0]                       # (B_PAD, 128)

    # stand-in UNet: tanh(feat @ W1 + b1) @ W2 + b2   (bf16 MXU, f32 accum)
    h = jnp.tanh(
        jnp.dot(feat.astype(jnp.bfloat16), w1_ref[...],
                preferred_element_type=jnp.float32) + b1_ref[...])
    eps = (
        jnp.dot(h.astype(jnp.bfloat16), w2_ref[...],
                preferred_element_type=jnp.float32) + b2_ref[...])

    inv_sa_t = coef_ref[4 * s + 0]
    sb_t = coef_ref[4 * s + 1]
    sa_n = coef_ref[4 * s + 2]
    sb_n = coef_ref[4 * s + 3]

    pred_x0 = (lat - sb_t * eps) * inv_sa_t
    new_lat = sa_n * pred_x0 + sb_n * eps
    lat_sc[...] = new_lat

    @pl.when(s == last)
    def _():
        lat_out_ref[...] = new_lat
        latdiff_ref[...] = jnp.abs(lat0_ref[...] - new_lat)


# ------------------------------ kernel wrappers ------------------------------
def pallas_encode_matmul(patches, w_pad, b_pad):
    M, K = patches.shape
    N = w_pad.shape[1]
    return pl.pallas_call(
        _encode_matmul_kernel,
        out_shape=jax.ShapeDtypeStruct((M, N), jnp.float32),
        grid=(1,),
        in_specs=[
            pl.BlockSpec((M, K), lambda i: (0, 0)),
            pl.BlockSpec((K, N), lambda i: (0, 0)),
            pl.BlockSpec((1, N), lambda i: (0, 0)),
        ],
        out_specs=pl.BlockSpec((M, N), lambda i: (0, 0)),
    )(patches, w_pad, b_pad)


def pallas_decode_dire(lat_rows, w_pad, b_pad, x_rows_pad):
    M, K = lat_rows.shape
    N = w_pad.shape[1]
    return pl.pallas_call(
        _decode_dire_kernel,
        out_shape=(jax.ShapeDtypeStruct((M, N), jnp.float32),
                   jax.ShapeDtypeStruct((M, N), jnp.float32)),
        grid=(1,),
        in_specs=[
            pl.BlockSpec((M, K), lambda i: (0, 0)),
            pl.BlockSpec((K, N), lambda i: (0, 0)),
            pl.BlockSpec((1, N), lambda i: (0, 0)),
            pl.BlockSpec((M, N), lambda i: (0, 0)),
        ],
        out_specs=[
            pl.BlockSpec((M, N), lambda i: (0, 0)),
            pl.BlockSpec((M, N), lambda i: (0, 0)),
        ],
    )(lat_rows, w_pad, b_pad, x_rows_pad)


def pallas_diffusion_loop(coefs, lat0_pad, extras, w1p, b1p, w2p, b2p):
    b_pad = lat0_pad.shape[0]
    total = extras.shape[0]
    return pl.pallas_call(
        _diffusion_loop_kernel,
        out_shape=(jax.ShapeDtypeStruct((b_pad, FEAT_DIM), jnp.float32),
                   jax.ShapeDtypeStruct((b_pad, FEAT_DIM), jnp.float32)),
        grid=(total,),
        in_specs=[
            pl.BlockSpec(memory_space=pltpu.MemorySpace.SMEM),        # coefs
            pl.BlockSpec((b_pad, FEAT_DIM), lambda s: (0, 0)),        # lat0
            pl.BlockSpec((1, b_pad, FEAT_DIM), lambda s: (s, 0, 0)),  # extras
            pl.BlockSpec((FEAT_DIM, HID_PAD), lambda s: (0, 0)),      # w1
            pl.BlockSpec((1, HID_PAD), lambda s: (0, 0)),             # b1
            pl.BlockSpec((HID_PAD, FEAT_DIM), lambda s: (0, 0)),      # w2
            pl.BlockSpec((1, FEAT_DIM), lambda s: (0, 0)),            # b2
        ],
        out_specs=[
            pl.BlockSpec((b_pad, FEAT_DIM), lambda s: (0, 0)),
            pl.BlockSpec((b_pad, FEAT_DIM), lambda s: (0, 0)),
        ],
        scratch_shapes=[pltpu.VMEM((b_pad, FEAT_DIM), jnp.float32)],
        compiler_params=pltpu.CompilerParams(
            dimension_semantics=("arbitrary",)),
    )(coefs, lat0_pad, extras, w1p, b1p, w2p, b2p)


# -------------------------- scheduler (plain numpy) --------------------------
def make_schedule(n_steps):
    # DDIMScheduler with SD's "scaled_linear" betas, steps_offset=1.
    betas = np.linspace(0.00085 ** 0.5, 0.012 ** 0.5, TRAIN_TIMESTEPS,
                        dtype=np.float64) ** 2
    alphas_cumprod = np.cumprod(1.0 - betas)
    step_ratio = TRAIN_TIMESTEPS // n_steps
    timesteps = (np.arange(0, n_steps) * step_ratio).round()[::-1].astype(np.int64) + 1
    return timesteps, alphas_cumprod, step_ratio


def timestep_embedding_np(t, dim):
    half = dim // 2
    freqs = np.exp(-np.log(10000.0) * np.arange(half, dtype=np.float64) / half)
    args = float(t) * freqs
    return np.concatenate([np.sin(args), np.cos(args)]).astype(np.float32)


def build_step_tables(n_steps):
    """Host-side per-step tables for the fused loop: inversion then sampling."""
    timesteps, ac, step_ratio = make_schedule(n_steps)
    coef_list, t_list = [], []
    # DDIM inversion: walk reversed timesteps pairwise.
    rev = timesteps[::-1]
    for i in range(len(rev) - 1):
        t, t_next = int(rev[i]), int(rev[i + 1])
        a_t, a_n = ac[t], ac[t_next]
        coef_list += [1.0 / a_t ** 0.5, (1 - a_t) ** 0.5,
                      a_n ** 0.5, (1 - a_n) ** 0.5]
        t_list.append(t)
    # DDIM sampling: descending timesteps, prev clamped to alphas_cumprod[0].
    for t in timesteps:
        t = int(t)
        prev_t = t - step_ratio
        a_t = ac[t]
        a_prev = ac[prev_t] if prev_t >= 0 else ac[0]
        coef_list += [1.0 / a_t ** 0.5, (1 - a_t) ** 0.5,
                      a_prev ** 0.5, (1 - a_prev) ** 0.5]
        t_list.append(t)
    coefs = np.asarray(coef_list, dtype=np.float32)                 # (4*total,)
    temb = np.stack([timestep_embedding_np(t, TEMB_DIM) for t in t_list])
    return coefs, temb.astype(np.float32)                           # , (total,32)


# ----------------------------- synthetic weights -----------------------------
def init_params(key):
    ks = jax.random.split(key, 5)
    s = 0.05
    feat_dim = LAT_FLAT + TEMB_DIM + TXT_DIM
    return dict(
        enc_w=s * jax.random.normal(ks[0], (PATCH_FEAT, 2 * C_LAT), jnp.float32),
        enc_b=jnp.zeros((1, 2 * C_LAT), jnp.float32),
        dec_w=s * jax.random.normal(ks[1], (C_LAT, PATCH_FEAT), jnp.float32),
        dec_b=jnp.zeros((1, PATCH_FEAT), jnp.float32),
        unet_w1=s * jax.random.normal(ks[2], (feat_dim, UNET_HID), jnp.float32),
        unet_b1=jnp.zeros((1, UNET_HID), jnp.float32),
        unet_w2=s * jax.random.normal(ks[3], (UNET_HID, LAT_FLAT), jnp.float32),
        unet_b2=jnp.zeros((1, LAT_FLAT), jnp.float32),
        # stand-in for pipe._encode_prompt([''] * B): the empty-prompt embedding
        text_emb=s * jax.random.normal(ks[4], (SEQ_LEN, TXT_DIM), jnp.float32),
    )


# ------------------------------- layout helpers -------------------------------
def pad2(a, rows, cols):
    return jnp.zeros((rows, cols), a.dtype).at[:a.shape[0], :a.shape[1]].set(a)


def patchify(x):  # (B, 3, 32, 32) -> (B*16, 192)
    B = x.shape[0]
    return (x.reshape(B, C_IN, H_LAT, PATCH, W_LAT, PATCH)
              .transpose(0, 2, 4, 1, 3, 5)
              .reshape(B * H_LAT * W_LAT, PATCH_FEAT))


def unpatchify(rows, B):  # (B*16, 192) -> (B, 3, 32, 32)
    return (rows.reshape(B, H_LAT, W_LAT, C_IN, PATCH, PATCH)
                .transpose(0, 3, 1, 4, 2, 5)
                .reshape(B, C_IN, H_IMG, W_IMG))


# ------------------------------- forward pass -------------------------------
def latent_dire_forward(x, params, eps_key, n_steps=4):
    """Returns (dire, latent_dire, reconstruction, latent_reconstruction, latent)."""
    B = x.shape[0]
    B_PAD = max(8, ((B + 7) // 8) * 8)
    coefs_np, temb_np = build_step_tables(n_steps)
    total = temb_np.shape[0]

    # ---- encode: stand-in for vae.encode(x).latent_dist.sample() * sf ----
    patches = patchify(x)                                   # (B*16, 192)
    enc_w_pad = pad2(params["enc_w"], PATCH_FEAT, LANE)     # (192, 128)
    enc_b_pad = pad2(params["enc_b"], 1, LANE)
    moments = pallas_encode_matmul(patches, enc_w_pad, enc_b_pad)[:, :2 * C_LAT]
    moments = moments.reshape(B, H_LAT, W_LAT, 2 * C_LAT).transpose(0, 3, 1, 2)
    mean, logvar = moments[:, :C_LAT], moments[:, C_LAT:]
    logvar = jnp.clip(logvar, -30.0, 20.0)
    eps = jax.random.normal(eps_key, mean.shape, mean.dtype)  # generator stand-in
    latent = (mean + jnp.exp(0.5 * logvar) * eps) * SCALING_FACTOR

    # ---- fused DDIM inversion + re-sampling loop (single pallas_call) ----
    lat0_pad = jnp.zeros((B_PAD, FEAT_DIM), jnp.float32)
    lat0_pad = lat0_pad.at[:B, :LAT_FLAT].set(latent.reshape(B, LAT_FLAT))
    txt = jnp.mean(params["text_emb"], axis=0)              # (32,)
    extras_row = jnp.concatenate(
        [jnp.zeros((total, LAT_FLAT), jnp.float32),
         jnp.asarray(temb_np),
         jnp.broadcast_to(txt[None, :], (total, TXT_DIM))], axis=-1)
    extras = jnp.broadcast_to(extras_row[:, None, :], (total, B_PAD, FEAT_DIM))
    w1p = pad2(params["unet_w1"], FEAT_DIM, HID_PAD).astype(jnp.bfloat16)
    b1p = pad2(params["unet_b1"], 1, HID_PAD)
    w2p = pad2(params["unet_w2"], HID_PAD, FEAT_DIM).astype(jnp.bfloat16)
    b2p = pad2(params["unet_b2"], 1, FEAT_DIM)

    lat_rec_pad, lat_diff_pad = pallas_diffusion_loop(
        jnp.asarray(coefs_np), lat0_pad, extras, w1p, b1p, w2p, b2p)
    latent_reconstruction = (
        lat_rec_pad[:B, :LAT_FLAT].reshape(B, C_LAT, H_LAT, W_LAT))
    latent_dire = lat_diff_pad[:B, :LAT_FLAT].reshape(B, C_LAT, H_LAT, W_LAT)

    # ---- fused decode + DIRE (|x - recon|) in patch-row layout ----
    lat_rows = ((latent_reconstruction / SCALING_FACTOR)
                .transpose(0, 2, 3, 1).reshape(B * H_LAT * W_LAT, C_LAT))
    dec_w_pad = pad2(params["dec_w"], C_LAT, DEC_PAD)       # (4, 256)
    dec_b_pad = pad2(params["dec_b"], 1, DEC_PAD)
    x_rows_pad = pad2(patches, B * H_LAT * W_LAT, DEC_PAD)  # (B*16, 256)
    recon_rows, dire_rows = pallas_decode_dire(
        lat_rows, dec_w_pad, dec_b_pad, x_rows_pad)
    reconstruction = unpatchify(recon_rows[:, :PATCH_FEAT], B).astype(jnp.float32)
    dire = unpatchify(dire_rows[:, :PATCH_FEAT], B).astype(jnp.float32)

    return dire, latent_dire, reconstruction, latent_reconstruction, latent


# ------------------------------------ main ------------------------------------
if __name__ == "__main__":
    key = jax.random.PRNGKey(0)
    kx, kp, ke = jax.random.split(key, 3)

    B = 2
    x = jax.random.uniform(kx, (B, C_IN, H_IMG, W_IMG), jnp.float32, -1.0, 1.0)
    params = init_params(kp)

    forward = jax.jit(latent_dire_forward, static_argnames=("n_steps",))
    outs = forward(x, params, ke, n_steps=4)
    outs = jax.block_until_ready(outs)

    dire, latent_dire, recon, lat_rec, lat = outs
    assert dire.shape == (B, C_IN, H_IMG, W_IMG) and dire.dtype == jnp.float32
    assert latent_dire.shape == (B, C_LAT, H_LAT, W_LAT)
    assert recon.shape == (B, C_IN, H_IMG, W_IMG) and recon.dtype == jnp.float32
    assert lat_rec.shape == (B, C_LAT, H_LAT, W_LAT)
    assert lat.shape == (B, C_LAT, H_LAT, W_LAT)
    assert bool(jnp.all(dire >= 0)) and bool(jnp.all(latent_dire >= 0))
    assert all(bool(jnp.all(jnp.isfinite(o))) for o in outs)

    print("KERNEL_OK")
</pallas_src>

<mosaic_0001>
module attributes {stable_mosaic.version = 11 : i64} {
  func.func @_encode_matmul_kernel(%arg0: i32, %arg1: memref<32x192xf32, #tpu.memory_space<vmem>>, %arg2: memref<192x128xf32, #tpu.memory_space<vmem>>, %arg3: memref<1x128xf32, #tpu.memory_space<vmem>>, %arg4: memref<32x128xf32, #tpu.memory_space<vmem>>) attributes {dimension_semantics = [#tpu.dimension_semantics<arbitrary>], iteration_bounds = array<i64: 1>, scalar_prefetch = 0 : i64, scratch_operands = 0 : i64, tpu.core_type = #tpu.core_type<tc>, window_params = [{pipeline_mode = #tpu.pipeline_mode<synchronous>, transform_indices = @transform_0, window_bounds = array<i64: 32, 192>}, {pipeline_mode = #tpu.pipeline_mode<synchronous>, transform_indices = @transform_1, window_bounds = array<i64: 192, 128>}, {pipeline_mode = #tpu.pipeline_mode<synchronous>, transform_indices = @transform_2, window_bounds = array<i64: 1, 128>}, {pipeline_mode = #tpu.pipeline_mode<synchronous>, transform_indices = @transform_3, window_bounds = array<i64: 32, 128>}]} {
    %c0 = arith.constant 0 : index
    %c0_0 = arith.constant 0 : index
    %0 = vector.load %arg1[%c0, %c0_0] : memref<32x192xf32, #tpu.memory_space<vmem>>, vector<32x192xf32>
    %c0_1 = arith.constant 0 : index
    %c0_2 = arith.constant 0 : index
    %1 = vector.load %arg2[%c0_1, %c0_2] : memref<192x128xf32, #tpu.memory_space<vmem>>, vector<192x128xf32>
    %cst = arith.constant dense<0.000000e+00> : vector<32x128xf32>
    %2 = tpu.matmul %0, %1, %cst {dimension_numbers = #tpu.dot_dimension_numbers<[1], [0], [0], [1], [0, 0, 1, 1], [], []>} : vector<32x192xf32>, vector<192x128xf32>, vector<32x128xf32> -> vector<32x128xf32>
    %c0_3 = arith.constant 0 : index
    %c0_4 = arith.constant 0 : index
    %3 = vector.load %arg3[%c0_3, %c0_4] : memref<1x128xf32, #tpu.memory_space<vmem>>, vector<1x128xf32>
    %4 = vector.broadcast %3 : vector<1x128xf32> to vector<32x128xf32>
    %5 = arith.addf %2, %4 : vector<32x128xf32>
    %c0_5 = arith.constant 0 : index
    %c0_6 = arith.constant 0 : index
    %6 = vector.load %arg4[%c0_5, %c0_6] : memref<32x128xf32, #tpu.memory_space<vmem>>, vector<32x128xf32>
    tpu.vector_store %arg4[%c0_5, %c0_6], %5 {strides = array<i32>} : memref<32x128xf32, #tpu.memory_space<vmem>>, vector<32x128xf32>,
    return
  }
  func.func @transform_0(%arg0: i32) -> (i32, i32) {
    %c0_i32 = arith.constant 0 : i32
    %c0_i32_0 = arith.constant 0 : i32
    %c0_i32_1 = arith.constant 0 : i32
    return %c0_i32, %c0_i32_0 : i32, i32
  }
  func.func @transform_1(%arg0: i32) -> (i32, i32) {
    %c0_i32 = arith.constant 0 : i32
    %c0_i32_0 = arith.constant 0 : i32
    %c0_i32_1 = arith.constant 0 : i32
    return %c0_i32, %c0_i32_0 : i32, i32
  }
  func.func @transform_2(%arg0: i32) -> (i32, i32) {
    %c0_i32 = arith.constant 0 : i32
    %c0_i32_0 = arith.constant 0 : i32
    %c0_i32_1 = arith.constant 0 : i32
    return %c0_i32, %c0_i32_0 : i32, i32
  }
  func.func @transform_3(%arg0: i32) -> (i32, i32) {
    %c0_i32 = arith.constant 0 : i32
    %c0_i32_0 = arith.constant 0 : i32
    %c0_i32_1 = arith.constant 0 : i32
    return %c0_i32, %c0_i32_0 : i32, i32
  }
}

module attributes {stable_mosaic.version = 11 : i64} {
  func.func @_diffusion_loop_kernel(%arg0: i32, %arg1: memref<28xf32, #tpu.memory_space<smem>>, %arg2: memref<8x128xf32, #tpu.memory_space<vmem>>, %arg3: memref<1x8x128xf32, #tpu.memory_space<vmem>>, %arg4: memref<128x128xbf16, #tpu.memory_space<vmem>>, %arg5: memref<1x128xf32, #tpu.memory_space<vmem>>, %arg6: memref<128x128xbf16, #tpu.memory_space<vmem>>, %arg7: memref<1x128xf32, #tpu.memory_space<vmem>>, %arg8: memref<8x128xf32, #tpu.memory_space<vmem>>, %arg9: memref<8x128xf32, #tpu.memory_space<vmem>>, %arg10: memref<8x128xf32, #tpu.memory_space<vmem>>) attributes {dimension_semantics = [#tpu.dimension_semantics<arbitrary>], iteration_bounds = array<i64: 7>, scalar_prefetch = 0 : i64, scratch_operands = 1 : i64, tpu.core_type = #tpu.core_type<tc>, window_params = [{transform_indices = @transform_0, window_bounds = array<i64: 28>}, {pipeline_mode = #tpu.pipeline_mode<synchronous>, transform_indices = @transform_1, window_bounds = array<i64: 8, 128>}, {transform_indices = @transform_2, window_bounds = array<i64: 1, 8, 128>}, {pipeline_mode = #tpu.pipeline_mode<synchronous>, transform_indices = @transform_3, window_bounds = array<i64: 128, 128>}, {pipeline_mode = #tpu.pipeline_mode<synchronous>, transform_indices = @transform_4, window_bounds = array<i64: 1, 128>}, {pipeline_mode = #tpu.pipeline_mode<synchronous>, transform_indices = @transform_5, window_bounds = array<i64: 128, 128>}, {pipeline_mode = #tpu.pipeline_mode<synchronous>, transform_indices = @transform_6, window_bounds = array<i64: 1, 128>}, {pipeline_mode = #tpu.pipeline_mode<synchronous>, transform_indices = @transform_7, window_bounds = array<i64: 8, 128>}, {pipeline_mode = #tpu.pipeline_mode<synchronous>, transform_indices = @transform_8, window_bounds = array<i64: 8, 128>}]} {
    %c0_i32 = arith.constant 0 : i32
    %0 = arith.cmpi eq, %arg0, %c0_i32 : i32
    %1 = arith.extui %0 : i1 to i32
    %c0_i32_0 = arith.constant 0 : i32
    %2 = arith.cmpi ne, %1, %c0_i32_0 : i32
    scf.if %2 {
      %c0_21 = arith.constant 0 : index
      %c0_22 = arith.constant 0 : index
      %50 = vector.load %arg2[%c0_21, %c0_22] : memref<8x128xf32, #tpu.memory_space<vmem>>, vector<8x128xf32>
      %c0_23 = arith.constant 0 : index
      %c0_24 = arith.constant 0 : index
      %51 = vector.load %arg10[%c0_23, %c0_24] : memref<8x128xf32, #tpu.memory_space<vmem>>, vector<8x128xf32>
      tpu.vector_store %arg10[%c0_23, %c0_24], %50 {strides = array<i32>} : memref<8x128xf32, #tpu.memory_space<vmem>>, vector<8x128xf32>,
    } else {
    }
    %c0 = arith.constant 0 : index
    %c0_1 = arith.constant 0 : index
    %3 = vector.load %arg10[%c0, %c0_1] : memref<8x128xf32, #tpu.memory_space<vmem>>, vector<8x128xf32>
    %c0_2 = arith.constant 0 : index
    %c0_3 = arith.constant 0 : index
    %c0_4 = arith.constant 0 : index
    %4 = vector.load %arg3[%c0_2, %c0_3, %c0_4] : memref<1x8x128xf32, #tpu.memory_space<vmem>>, vector<1x8x128xf32>
    %5 = vector.shape_cast %4 : vector<1x8x128xf32> to vector<8x128xf32>
    %6 = arith.addf %3, %5 : vector<8x128xf32>
    %7 = arith.truncf %6 : vector<8x128xf32> to vector<8x128xbf16>
    %c0_5 = arith.constant 0 : index
    %c0_6 = arith.constant 0 : index
    %8 = vector.load %arg4[%c0_5, %c0_6] : memref<128x128xbf16, #tpu.memory_space<vmem>>, vector<128x128xbf16>
    %cst = arith.constant dense<0.000000e+00> : vector<8x128xf32>
    %9 = tpu.matmul %7, %8, %cst {dimension_numbers = #tpu.dot_dimension_numbers<[1], [0], [0], [1], [0, 0, 1, 1], [], []>} : vector<8x128xbf16>, vector<128x128xbf16>, vector<8x128xf32> -> vector<8x128xf32>
    %c0_7 = arith.constant 0 : index
    %c0_8 = arith.constant 0 : index
    %10 = vector.load %arg5[%c0_7, %c0_8] : memref<1x128xf32, #tpu.memory_space<vmem>>, vector<1x128xf32>
    %11 = vector.broadcast %10 : vector<1x128xf32> to vector<8x128xf32>
    %12 = arith.addf %9, %11 : vector<8x128xf32>
    %13 = math.tanh %12 : vector<8x128xf32>
    %14 = arith.truncf %13 : vector<8x128xf32> to vector<8x128xbf16>
    %c0_9 = arith.constant 0 : index
    %c0_10 = arith.constant 0 : index
    %15 = vector.load %arg6[%c0_9, %c0_10] : memref<128x128xbf16, #tpu.memory_space<vmem>>, vector<128x128xbf16>
    %cst_11 = arith.constant dense<0.000000e+00> : vector<8x128xf32>
    %16 = tpu.matmul %14, %15, %cst_11 {dimension_numbers = #tpu.dot_dimension_numbers<[1], [0], [0], [1], [0, 0, 1, 1], [], []>} : vector<8x128xbf16>, vector<128x128xbf16>, vector<8x128xf32> -> vector<8x128xf32>
    %c0_12 = arith.constant 0 : index
    %c0_13 = arith.constant 0 : index
    %17 = vector.load %arg7[%c0_12, %c0_13] : memref<1x128xf32, #tpu.memory_space<vmem>>, vector<1x128xf32>
    %18 = vector.broadcast %17 : vector<1x128xf32> to vector<8x128xf32>
    %19 = arith.addf %16, %18 : vector<8x128xf32>
    %c4_i32 = arith.constant 4 : i32
    %20 = arith.muli %c4_i32, %arg0 : i32
    %c0_i32_14 = arith.constant 0 : i32
    %21 = arith.addi %20, %c0_i32_14 : i32
    %22 = arith.index_cast %21 : i32 to index
    %23 = memref.load %arg1[%22] : memref<28xf32, #tpu.memory_space<smem>>
    %c4_i32_15 = arith.constant 4 : i32
    %24 = arith.muli %c4_i32_15, %arg0 : i32
    %c1_i32 = arith.constant 1 : i32
    %25 = arith.addi %24, %c1_i32 : i32
    %26 = arith.index_cast %25 : i32 to index
    %27 = memref.load %arg1[%26] : memref<28xf32, #tpu.memory_space<smem>>
    %c4_i32_16 = arith.constant 4 : i32
    %28 = arith.muli %c4_i32_16, %arg0 : i32
    %c2_i32 = arith.constant 2 : i32
    %29 = arith.addi %28, %c2_i32 : i32
    %30 = arith.index_cast %29 : i32 to index
    %31 = memref.load %arg1[%30] : memref<28xf32, #tpu.memory_space<smem>>
    %c4_i32_17 = arith.constant 4 : i32
    %32 = arith.muli %c4_i32_17, %arg0 : i32
    %c3_i32 = arith.constant 3 : i32
    %33 = arith.addi %32, %c3_i32 : i32
    %34 = arith.index_cast %33 : i32 to index
    %35 = memref.load %arg1[%34] : memref<28xf32, #tpu.memory_space<smem>>
    %36 = vector.broadcast %27 : f32 to vector<8x128xf32>
    %37 = arith.mulf %36, %19 : vector<8x128xf32>
    %38 = arith.subf %3, %37 : vector<8x128xf32>
    %39 = vector.broadcast %23 : f32 to vector<8x128xf32>
    %40 = arith.mulf %38, %39 : vector<8x128xf32>
    %41 = vector.broadcast %31 : f32 to vector<8x128xf32>
    %42 = arith.mulf %41, %40 : vector<8x128xf32>
    %43 = vector.broadcast %35 : f32 to vector<8x128xf32>
    %44 = arith.mulf %43, %19 : vector<8x128xf32>
    %45 = arith.addf %42, %44 : vector<8x128xf32>
    %c0_18 = arith.constant 0 : index
    %c0_19 = arith.constant 0 : index
    %46 = vector.load %arg10[%c0_18, %c0_19] : memref<8x128xf32, #tpu.memory_space<vmem>>, vector<8x128xf32>
    tpu.vector_store %arg10[%c0_18, %c0_19], %45 {strides = array<i32>} : memref<8x128xf32, #tpu.memory_space<vmem>>, vector<8x128xf32>,
    %c6_i32 = arith.constant 6 : i32
    %47 = arith.cmpi eq, %arg0, %c6_i32 : i32
    %48 = arith.extui %47 : i1 to i32
    %c0_i32_20 = arith.constant 0 : i32
    %49 = arith.cmpi ne, %48, %c0_i32_20 : i32
    scf.if %49 {
      %c0_21 = arith.constant 0 : index
      %c0_22 = arith.constant 0 : index
      %50 = vector.load %arg8[%c0_21, %c0_22] : memref<8x128xf32, #tpu.memory_space<vmem>>, vector<8x128xf32>
      tpu.vector_store %arg8[%c0_21, %c0_22], %45 {strides = array<i32>} : memref<8x128xf32, #tpu.memory_space<vmem>>, vector<8x128xf32>,
      %c0_23 = arith.constant 0 : index
      %c0_24 = arith.constant 0 : index
      %51 = vector.load %arg2[%c0_23, %c0_24] : memref<8x128xf32, #tpu.memory_space<vmem>>, vector<8x128xf32>
      %52 = arith.subf %51, %45 : vector<8x128xf32>
      %53 = math.absf %52 : vector<8x128xf32>
      %c0_25 = arith.constant 0 : index
      %c0_26 = arith.constant 0 : index
      %54 = vector.load %arg9[%c0_25, %c0_26] : memref<8x128xf32, #tpu.memory_space<vmem>>, vector<8x128xf32>
      tpu.vector_store %arg9[%c0_25, %c0_26], %53 {strides = array<i32>} : memref<8x128xf32, #tpu.memory_space<vmem>>, vector<8x128xf32>,
    } else {
    }
    return
  }
  func.func @transform_0(%arg0: i32) -> i32 {
    %c0_i32 = arith.constant 0 : i32
    %c0_i32_0 = arith.constant 0 : i32
    return %c0_i32 : i32
  }
  func.func @transform_1(%arg0: i32) -> (i32, i32) {
    %c0_i32 = arith.constant 0 : i32
    %c0_i32_0 = arith.constant 0 : i32
    %c0_i32_1 = arith.constant 0 : i32
    return %c0_i32, %c0_i32_0 : i32, i32
  }
  func.func @transform_2(%arg0: i32) -> (i32, i32, i32) {
    %c0_i32 = arith.constant 0 : i32
    %c0_i32_0 = arith.constant 0 : i32
    %c0_i32_1 = arith.constant 0 : i32
    return %arg0, %c0_i32, %c0_i32_0 : i32, i32, i32
  }
  func.func @transform_3(%arg0: i32) -> (i32, i32) {
    %c0_i32 = arith.constant 0 : i32
    %c0_i32_0 = arith.constant 0 : i32
    %c0_i32_1 = arith.constant 0 : i32
    return %c0_i32, %c0_i32_0 : i32, i32
  }
  func.func @transform_4(%arg0: i32) -> (i32, i32) {
    %c0_i32 = arith.constant 0 : i32
    %c0_i32_0 = arith.constant 0 : i32
    %c0_i32_1 = arith.constant 0 : i32
    return %c0_i32, %c0_i32_0 : i32, i32
  }
  func.func @transform_5(%arg0: i32) -> (i32, i32) {
    %c0_i32 = arith.constant 0 : i32
    %c0_i32_0 = arith.constant 0 : i32
    %c0_i32_1 = arith.constant 0 : i32
    return %c0_i32, %c0_i32_0 : i32, i32
  }
  func.func @transform_6(%arg0: i32) -> (i32, i32) {
    %c0_i32 = arith.constant 0 : i32
    %c0_i32_0 = arith.constant 0 : i32
    %c0_i32_1 = arith.constant 0 : i32
    return %c0_i32, %c0_i32_0 : i32, i32
  }
  func.func @transform_7(%arg0: i32) -> (i32, i32) {
    %c0_i32 = arith.constant 0 : i32
    %c0_i32_0 = arith.constant 0 : i32
    %c0_i32_1 = arith.constant 0 : i32
    return %c0_i32, %c0_i32_0 : i32, i32
  }
  func.func @transform_8(%arg0: i32) -> (i32, i32) {
    %c0_i32 = arith.constant 0 : i32
    %c0_i32_0 = arith.constant 0 : i32
    %c0_i32_1 = arith.constant 0 : i32
    return %c0_i32, %c0_i32_0 : i32, i32
  }
}

module attributes {stable_mosaic.version = 11 : i64} {
  func.func @_decode_dire_kernel(%arg0: i32, %arg1: memref<32x4xf32, #tpu.memory_space<vmem>>, %arg2: memref<4x256xf32, #tpu.memory_space<vmem>>, %arg3: memref<1x256xf32, #tpu.memory_space<vmem>>, %arg4: memref<32x256xf32, #tpu.memory_space<vmem>>, %arg5: memref<32x256xf32, #tpu.memory_space<vmem>>, %arg6: memref<32x256xf32, #tpu.memory_space<vmem>>) attributes {dimension_semantics = [#tpu.dimension_semantics<arbitrary>], iteration_bounds = array<i64: 1>, scalar_prefetch = 0 : i64, scratch_operands = 0 : i64, tpu.core_type = #tpu.core_type<tc>, window_params = [{pipeline_mode = #tpu.pipeline_mode<synchronous>, transform_indices = @transform_0, window_bounds = array<i64: 32, 4>}, {pipeline_mode = #tpu.pipeline_mode<synchronous>, transform_indices = @transform_1, window_bounds = array<i64: 4, 256>}, {pipeline_mode = #tpu.pipeline_mode<synchronous>, transform_indices = @transform_2, window_bounds = array<i64: 1, 256>}, {pipeline_mode = #tpu.pipeline_mode<synchronous>, transform_indices = @transform_3, window_bounds = array<i64: 32, 256>}, {pipeline_mode = #tpu.pipeline_mode<synchronous>, transform_indices = @transform_4, window_bounds = array<i64: 32, 256>}, {pipeline_mode = #tpu.pipeline_mode<synchronous>, transform_indices = @transform_5, window_bounds = array<i64: 32, 256>}]} {
    %c0 = arith.constant 0 : index
    %c0_0 = arith.constant 0 : index
    %0 = vector.load %arg1[%c0, %c0_0] : memref<32x4xf32, #tpu.memory_space<vmem>>, vector<32x4xf32>
    %c0_1 = arith.constant 0 : index
    %c0_2 = arith.constant 0 : index
    %1 = vector.load %arg2[%c0_1, %c0_2] : memref<4x256xf32, #tpu.memory_space<vmem>>, vector<4x256xf32>
    %cst = arith.constant dense<0.000000e+00> : vector<32x256xf32>
    %2 = tpu.matmul %0, %1, %cst {dimension_numbers = #tpu.dot_dimension_numbers<[1], [0], [0], [1], [0, 0, 1, 1], [], []>} : vector<32x4xf32>, vector<4x256xf32>, vector<32x256xf32> -> vector<32x256xf32>
    %c0_3 = arith.constant 0 : index
    %c0_4 = arith.constant 0 : index
    %3 = vector.load %arg3[%c0_3, %c0_4] : memref<1x256xf32, #tpu.memory_space<vmem>>, vector<1x256xf32>
    %4 = vector.broadcast %3 : vector<1x256xf32> to vector<32x256xf32>
    %5 = arith.addf %2, %4 : vector<32x256xf32>
    %6 = math.tanh %5 : vector<32x256xf32>
    %c0_5 = arith.constant 0 : index
    %c0_6 = arith.constant 0 : index
    %7 = vector.load %arg5[%c0_5, %c0_6] : memref<32x256xf32, #tpu.memory_space<vmem>>, vector<32x256xf32>
    tpu.vector_store %arg5[%c0_5, %c0_6], %6 {strides = array<i32>} : memref<32x256xf32, #tpu.memory_space<vmem>>, vector<32x256xf32>,
    %c0_7 = arith.constant 0 : index
    %c0_8 = arith.constant 0 : index
    %8 = vector.load %arg4[%c0_7, %c0_8] : memref<32x256xf32, #tpu.memory_space<vmem>>, vector<32x256xf32>
    %9 = arith.subf %8, %6 : vector<32x256xf32>
    %10 = math.absf %9 : vector<32x256xf32>
    %c0_9 = arith.constant 0 : index
    %c0_10 = arith.constant 0 : index
    %11 = vector.load %arg6[%c0_9, %c0_10] : memref<32x256xf32, #tpu.memory_space<vmem>>, vector<32x256xf32>
    tpu.vector_store %arg6[%c0_9, %c0_10], %10 {strides = array<i32>} : memref<32x256xf32, #tpu.memory_space<vmem>>, vector<32x256xf32>,
    return
  }
  func.func @transform_0(%arg0: i32) -> (i32, i32) {
    %c0_i32 = arith.constant 0 : i32
    %c0_i32_0 = arith.constant 0 : i32
    %c0_i32_1 = arith.constant 0 : i32
    return %c0_i32, %c0_i32_0 : i32, i32
  }
  func.func @transform_1(%arg0: i32) -> (i32, i32) {
    %c0_i32 = arith.constant 0 : i32
    %c0_i32_0 = arith.constant 0 : i32
    %c0_i32_1 = arith.constant 0 : i32
    return %c0_i32, %c0_i32_0 : i32, i32
  }
  func.func @transform_2(%arg0: i32) -> (i32, i32) {
    %c0_i32 = arith.constant 0 : i32
    %c0_i32_0 = arith.constant 0 : i32
    %c0_i32_1 = arith.constant 0 : i32
    return %c0_i32, %c0_i32_0 : i32, i32
  }
  func.func @transform_3(%arg0: i32) -> (i32, i32) {
    %c0_i32 = arith.constant 0 : i32
    %c0_i32_0 = arith.constant 0 : i32
    %c0_i32_1 = arith.constant 0 : i32
    return %c0_i32, %c0_i32_0 : i32, i32
  }
  func.func @transform_4(%arg0: i32) -> (i32, i32) {
    %c0_i32 = arith.constant 0 : i32
    %c0_i32_0 = arith.constant 0 : i32
    %c0_i32_1 = arith.constant 0 : i32
    return %c0_i32, %c0_i32_0 : i32, i32
  }
  func.func @transform_5(%arg0: i32) -> (i32, i32) {
    %c0_i32 = arith.constant 0 : i32
    %c0_i32_0 = arith.constant 0 : i32
    %c0_i32_1 = arith.constant 0 : i32
    return %c0_i32, %c0_i32_0 : i32, i32
  }
}

</mosaic_0001>

<llo_original>
// kernel: latent_dire_forward.3
$region0: #{latent_dire_forward.3}
  #allocation0 [shape = 'u32[]', space=smem, size = 0x4, offset = 0x4, fixed_abs, tag = 'smem constant byte address 0x4 - core index']
  #allocation1 [shape = 'u32[144,128]{1,0:T(1,128)}', space=vmem, size = 0x12000, scoped, tag = 'internal scratch']
  %s0 = inlined_call_operand.vmem [shape: f32[32,192], index: 0, kind: input, shape index: {}]
  %s1 = inlined_call_operand.vmem [shape: f32[192,128], index: 1, kind: input, shape index: {}]
  %s2 = inlined_call_operand.vmem [shape: f32[1,128], index: 2, kind: input, shape index: {}]
  %s3 = inlined_call_operand.vmem [shape: f32[32,128], index: 3, kind: output, shape index: {}]
  %s4 = sld [smem:[#allocation0]]
  $region22: #{latent_dire_forward.3} parent=0
    _
  %s6 = ssub.s32 1, %s4
  %s7 = scalar_select 0, %s6, %s4
  // Predicated region
  $region2: #{latent_dire_forward.3} parent=0 // pred_check
    _
  $region3: #{latent_dire_forward.3} parent=0 // pred_check_branch
    %9 = sbr.rel (0) target = $region5
  $region4: #{latent_dire_forward.3} parent=0 // pred_region
    _
  $region5: #{latent_dire_forward.3} parent=0 // pred_fallthru
    _
  // Predicated region
  $region6: #{latent_dire_forward.3} parent=0 // pred_check
    _
  $region7: #{latent_dire_forward.3} parent=0 // pred_check_branch
    %11 = sbr.rel (0) target = $region9
  $region8: #{latent_dire_forward.3} parent=0 // pred_region
    _
  $region9: #{latent_dire_forward.3} parent=0 // pred_fallthru
    _
  // Predicated region
  $region10: #{latent_dire_forward.3} parent=0 // pred_check
    _
  $region11: #{latent_dire_forward.3} parent=0 // pred_check_branch
    %13 = sbr.rel (0) target = $region13
  $region12: #{latent_dire_forward.3} parent=0 // pred_region
    _
  $region13: #{latent_dire_forward.3} parent=0 // pred_fallthru
    _
  %v14 = vld [vmem:[%s0] sm:$0xff]
  %v15 = vld [vmem:[%s0 + $0x8] sm:$0xff]
  %v16 = vld [vmem:[%s0 + $0x10] sm:$0xff]
  %v17 = vld [vmem:[%s0 + $0x18] sm:$0xff]
  %v18 = vld [vmem:[%s0 + $0x20] sm:$0xff]
  %v19 = vld [vmem:[%s0 + $0x28] sm:$0xff]
  %v20 = vld [vmem:[%s0 + $0x30] sm:$0xff]
  %v21 = vld [vmem:[%s0 + $0x38] sm:$0xff]
  %v22 = vld [vmem:[%s1] sm:$0xff]
  %v23 = vld [vmem:[%s1 + $0x8] sm:$0xff]
  %v24 = vld [vmem:[%s1 + $0x10] sm:$0xff]
  %v25 = vld [vmem:[%s1 + $0x18] sm:$0xff]
  %v26 = vld [vmem:[%s1 + $0x20] sm:$0xff]
  %v27 = vld [vmem:[%s1 + $0x28] sm:$0xff]
  %v28 = vld [vmem:[%s1 + $0x30] sm:$0xff]
  %v29 = vld [vmem:[%s1 + $0x38] sm:$0xff]
  %v30 = vld [vmem:[%s1 + $0x40] sm:$0xff]
  %v31 = vld [vmem:[%s1 + $0x48] sm:$0xff]
  %v32 = vld [vmem:[%s1 + $0x50] sm:$0xff]
  %v33 = vld [vmem:[%s1 + $0x58] sm:$0xff]
  %v34 = vld [vmem:[%s1 + $0x60] sm:$0xff]
  %v35 = vld [vmem:[%s1 + $0x68] sm:$0xff]
  %v36 = vld [vmem:[%s1 + $0x70] sm:$0xff]
  %v37 = vld [vmem:[%s1 + $0x78] sm:$0xff]
  %v38 = vld [vmem:[%s1 + $0x80] sm:$0xff]
  %v39 = vld [vmem:[%s1 + $0x88] sm:$0xff]
  %v40 = vld [vmem:[%s1 + $0x90] sm:$0xff]
  %v41 = vld [vmem:[%s1 + $0x98] sm:$0xff]
  %v42 = vld [vmem:[%s1 + $0xa0] sm:$0xff]
  %v43 = vld [vmem:[%s1 + $0xa8] sm:$0xff]
  %v44 = vld [vmem:[%s1 + $0xb0] sm:$0xff]
  %v45 = vld [vmem:[%s1 + $0xb8] sm:$0xff]
  %v46 = vld [vmem:[%s2] sm:$0x1]
  %v48 = vlaneseq
  %v49 = vshrl.u32 %v48, 7
  %v50 = vsub.s32 0, %v49
  %v51 = vrot.slane %v46, %v50
  %vm53 = vcmask 523264
  %v55 = vsel %vm53, %v15, 0
  %v58 = vsel %vm53, %v17, 0
  %v61 = vsel %vm53, %v19, 0
  %v64 = vsel %vm53, %v21, 0
  %66 = vmatprep.subr.mxu0 0.0
  %67 = vmatpush1.msra.mxu0 %v37
  %68 = vmatprep.subr.mxu0 0.0
  %69 = vmatpush1.msra.mxu0 %v36
  %70 = vmatprep.subr.mxu0 0.0
  %71 = vmatpush1.msra.mxu0 %v35
  %72 = vmatprep.subr.mxu0 0.0
  %73 = vmatpush1.msra.mxu0 %v34
  %74 = vmatprep.subr.mxu0 0.0
  %75 = vmatpush1.msra.mxu0 %v33
  %76 = vmatprep.subr.mxu0 0.0
  %77 = vmatpush1.msra.mxu0 %v32
  %78 = vmatprep.subr.mxu0 0.0
  %79 = vmatpush1.msra.mxu0 %v31
  %80 = vmatprep.subr.mxu0 0.0
  %81 = vmatpush1.msra.mxu0 %v30
  %82 = vmatprep.subr.mxu0 0.0
  %83 = vmatpush1.msra.mxu0 %v29
  %84 = vmatprep.subr.mxu0 0.0
  %85 = vmatpush1.msra.mxu0 %v28
  %86 = vmatprep.subr.mxu0 0.0
  %87 = vmatpush1.msra.mxu0 %v27
  %88 = vmatprep.subr.mxu0 0.0
  %89 = vmatpush1.msra.mxu0 %v26
  %90 = vmatprep.subr.mxu0 0.0
  %91 = vmatpush1.msra.mxu0 %v25
  %92 = vmatprep.subr.mxu0 0.0
  %93 = vmatpush1.msra.mxu0 %v24
  %94 = vmatprep.subr.mxu0 0.0
  %95 = vmatpush1.msra.mxu0 %v23
  %96 = vmatprep.subr.mxu0 0.0
  %97 = vmatpush1.msra.mxu0 %v22
  %98 = vmatprep.subr.mxu0 0.0
  %99 = vmatpush2.msra.mxu0 0.0
  %100 = vmatprep.subr.mxu0 0.0
  %101 = vmatpush2.msra.mxu0 0.0
  %102 = vmatprep.subr.mxu0 0.0
  %103 = vmatpush2.msra.mxu0 0.0
  %104 = vmatprep.subr.mxu0 0.0
  %105 = vmatpush2.msra.mxu0 0.0
  %106 = vmatprep.subr.mxu0 0.0
  %107 = vmatpush2.msra.mxu0 0.0
  %108 = vmatprep.subr.mxu0 0.0
  %109 = vmatpush2.msra.mxu0 0.0
  %110 = vmatprep.subr.mxu0 0.0
  %111 = vmatpush2.msra.mxu0 0.0
  %112 = vmatprep.subr.mxu0 0.0
  %113 = vmatpush2.msra.mxu0 0.0
  %114 = vmatprep.subr.mxu0 0.0
  %115 = vmatpush2.msra.mxu0 %v45
  %116 = vmatprep.subr.mxu0 0.0
  %117 = vmatpush2.msra.mxu0 %v44
  %118 = vmatprep.subr.mxu0 0.0
  %119 = vmatpush2.msra.mxu0 %v43
  %120 = vmatprep.subr.mxu0 0.0
  %121 = vmatpush2.msra.mxu0 %v42
  %122 = vmatprep.subr.mxu0 0.0
  %123 = vmatpush2.msra.mxu0 %v41
  %124 = vmatprep.subr.mxu0 0.0
  %125 = vmatpush2.msra.mxu0 %v40
  %126 = vmatprep.subr.mxu0 0.0
  %127 = vmatpush2.msra.mxu0 %v39
  %128 = vmatprep.subr.mxu0 0.0
  %129 = vmatpush2.msra.mxu0 %v38
  %130 = vmatprep.mubr.f32.mxu0 %v55
  %131 = vmatmul.mubr.f32.gmra.mxu0 %v14
  %v132 = vpop.f32.mrf.mxu0
  %v133 = vadd.f32 %v51, %v132
  %v134 = vpop.f32.mrf.mxu0
  %135 = vmatprep.mubr.f32.mxu0 %v58
  %136 = vmatmul.mubr.f32.gmra.mxu0 %v16
  %v137 = vpop.f32.mrf.mxu0
  %v138 = vadd.f32 %v51, %v137
  %v139 = vpop.f32.mrf.mxu0
  %140 = vmatprep.mubr.f32.mxu0 %v61
  %141 = vmatmul.mubr.f32.gmra.mxu0 %v18
  %v142 = vpop.f32.mrf.mxu0
  %v143 = vadd.f32 %v51, %v142
  %v144 = vpop.f32.mrf.mxu0
  %145 = vmatprep.mubr.f32.mxu0 %v64
  %146 = vmatmul.mubr.f32.gmra.mxu0 %v20
  %v147 = vpop.f32.mrf.mxu0
  %v148 = vadd.f32 %v51, %v147
  %v149 = vpop.f32.mrf.mxu0
  %150 = vdwg.mxu0
  %151 = vst [vmem:[%s3] sm:$0xff] %v133
  %152 = vst [vmem:[%s3 + $0x8] sm:$0xff] %v138
  %153 = vst [vmem:[%s3 + $0x10] sm:$0xff] %v143
  %154 = vst [vmem:[%s3 + $0x18] sm:$0xff] %v148
  // Predicated region
  $region14: #{latent_dire_forward.3} parent=0 // pred_check
    _
  $region15: #{latent_dire_forward.3} parent=0 // pred_check_branch
    %156 = sbr.rel (0) target = $region17
  $region16: #{latent_dire_forward.3} parent=0 // pred_region
    _
  $region17: #{latent_dire_forward.3} parent=0 // pred_fallthru
    _
  // Predicated region
  $region18: #{latent_dire_forward.3} parent=0 // pred_check
    _
  $region19: #{latent_dire_forward.3} parent=0 // pred_check_branch
    %158 = sbr.rel (0) target = $region21
  $region20: #{latent_dire_forward.3} parent=0 // pred_region
    _
  $region21: #{latent_dire_forward.3} parent=0 // pred_fallthru
    _

// kernel: latent_dire_forward.4
$region0: #{latent_dire_forward.4}
  #allocation0 [shape = 'u32[]', space=smem, size = 0x4, offset = 0x4, fixed_abs, tag = 'smem constant byte address 0x4 - core index']
  #allocation1 [shape = 'u32[144,128]{1,0:T(1,128)}', space=vmem, size = 0x12000, scoped, tag = 'internal scratch']
  #allocation2 [shape = 'f32[8,128]{1,0:T(8,128)}', space=vmem, size = 0x1000, scoped, tag = 'scratch operand']
  %s0 = inlined_call_operand.vmem [shape: f32[28], index: 0, kind: input, shape index: {}]
  %s1 = inlined_call_operand.vmem [shape: f32[8,128], index: 1, kind: input, shape index: {}]
  %s2 = inlined_call_operand.vmem [shape: f32[7,8,128], index: 2, kind: input, shape index: {}]
  %s3 = inlined_call_operand.vmem [shape: bf16[128,128], index: 3, kind: input, shape index: {}]
  %s4 = inlined_call_operand.vmem [shape: f32[1,128], index: 4, kind: input, shape index: {}]
  %s5 = inlined_call_operand.vmem [shape: bf16[128,128], index: 5, kind: input, shape index: {}]
  %s6 = inlined_call_operand.vmem [shape: f32[1,128], index: 6, kind: input, shape index: {}]
  %s7 = inlined_call_operand.vmem [shape: f32[8,128], index: 7, kind: output, shape index: {0}]
  %s8 = inlined_call_operand.vmem [shape: f32[8,128], index: 8, kind: output, shape index: {1}]
  %9 = xla_tuple %s7, %s8
  %s10 = sld [smem:[#allocation0]]
  $region81: #{latent_dire_forward.4} parent=0
    _
  %s12 = ssub.s32 1, %s10
  %s13 = scalar_select 0, %s12, %s10
  $region1: #{latent_dire_forward.4} parent=0
    #allocation3 [shape = 'u8[512]{0}', space=smem, size = 0x200, scoped, tag = 'input window, operand 0, single buffered']
    #allocation4 [shape = 's32[2]{0}', space=sflag, size = 0x8, scoped, tag = 'scoped memory for latent_dire_forward.4']
    %14 = vsyncpa [#allocation4], 0
    loop: start=0, step=1, limit=9
    $region2: #{latent_dire_forward.4} parent=1 // loop_pre_header
      _
    $region3: #{latent_dire_forward.4} parent=1 // loop_header
      %s16 = sphi 0, %s20
      %p17 = scmp.ge.s32.totalorder %s16, 9
      %s24 = sphi 0, %s24
      %s26 = sphi 0, %s24
      %s27 = sphi 0, %s26
      %s41 = sphi 0, %s27
      %s45 = sphi 0, %s45
      %s47 = sphi 0, %s45
      %s48 = sphi 0, %s47
      %s62 = sphi 0, %s48
      %s68 = sphi 0, %s70
      %s71 = sphi 0, %s68
      %s72 = sphi 0, %s71
      %s88 = sphi 0, %s72
      %s92 = sphi 0, %s92
      %s94 = sphi 0, %s92
      %s95 = sphi 0, %s94
      %s109 = sphi 0, %s95
      %s113 = sphi 0, %s113
      %s115 = sphi 0, %s113
      %s116 = sphi 0, %s115
      %s130 = sphi 0, %s116
      %s134 = sphi 0, %s134
      %s136 = sphi 0, %s134
      %s137 = sphi 0, %s136
      %s151 = sphi 0, %s137
      %s155 = sphi 0, %s155
      %s157 = sphi 0, %s155
      %s158 = sphi 0, %s157
      %s172 = sphi 0, %s158
      %s176 = sphi 0, %s176
      %s178 = sphi 0, %s176
      %s179 = sphi 0, %s178
      %s193 = sphi 0, %s179
      %s197 = sphi 0, %s197
      %s199 = sphi 0, %s197
      %s200 = sphi 0, %s199
      %s214 = sphi 0, %s200
    $region4: #{latent_dire_forward.4} parent=1 // loop_header_branch
      %19 = sbr.rel (%p17) target = $region8
    $region5: #{latent_dire_forward.4} parent=1 // loop_body
      %s21 = ssub.s32 %s16, 1
      %s22 = ssub.s32 %s16, 2
      %s23 = sadd.s32 %s16, 1
      %s25 = sadd.s32 %s24, 1
      %p28 = scmp.eq.s32.totalorder %s16, 6
      %p29 = scmp.ne.s32.totalorder %s24, %s26
      %p30 = scmp.eq.s32.totalorder %s16, 0
      %p31 = por %p29, %p30
      %p32 = scmp.ne.s32.totalorder %s24, %s26
      %p33 = scmp.eq.s32.totalorder %s21, 6
      %p34 = por %p32, %p33
      %p35 = scmp.ne.s32.totalorder %s26, %s27
      %p36 = scmp.eq.s32.totalorder %s21, 0
      %p37 = por %p35, %p36
      %p38 = scmp.ne.s32.totalorder %s26, %s27
      %p39 = scmp.eq.s32.totalorder %s22, 6
      %p40 = por %p38, %p39
      %p42 = scmp.ne.s32.totalorder %s27, %s41
      %p43 = scmp.eq.s32.totalorder %s22, 0
      %p44 = por %p42, %p43
      %s46 = sadd.s32 %s45, 1
      %p49 = scmp.eq.s32.totalorder %s16, 6
      %p50 = scmp.ne.s32.totalorder %s45, %s47
      %p51 = scmp.eq.s32.totalorder %s16, 0
      %p52 = por %p50, %p51
      %p53 = scmp.ne.s32.totalorder %s45, %s47
      %p54 = scmp.eq.s32.totalorder %s21, 6
      %p55 = por %p53, %p54
      %p56 = scmp.ne.s32.totalorder %s47, %s48
      %p57 = scmp.eq.s32.totalorder %s21, 0
      %p58 = por %p56, %p57
      %p59 = scmp.ne.s32.totalorder %s47, %s48
      %p60 = scmp.eq.s32.totalorder %s22, 6
      %p61 = por %p59, %p60
      %p63 = scmp.ne.s32.totalorder %s48, %s62
      %p64 = scmp.eq.s32.totalorder %s22, 0
      %p65 = por %p63, %p64
      %s66 = ssub.s32 %s16, %s23
      %p67 = scmp.eq.s32.totalorder %s66, 0
      %s69 = sadd.s32 %s68, 1
      %s70 = scalar_select %p67, %s68, %s69
      %p73 = pneg %p67
      %p74 = scmp.eq.s32.totalorder %s16, 6
      %p75 = por %p73, %p74
      %p76 = scmp.ne.s32.totalorder %s68, %s71
      %p77 = scmp.eq.s32.totalorder %s16, 0
      %p78 = por %p76, %p77
      %p79 = scmp.ne.s32.totalorder %s68, %s71
      %p80 = scmp.eq.s32.totalorder %s21, 6
      %p81 = por %p79, %p80
      %p82 = scmp.ne.s32.totalorder %s71, %s72
      %p83 = scmp.eq.s32.totalorder %s21, 0
      %p84 = por %p82, %p83
      %p85 = scmp.ne.s32.totalorder %s71, %s72
      %p86 = scmp.eq.s32.totalorder %s22, 6
      %p87 = por %p85, %p86
      %p89 = scmp.ne.s32.totalorder %s72, %s88
      %p90 = scmp.eq.s32.totalorder %s22, 0
      %p91 = por %p89, %p90
      %s93 = sadd.s32 %s92, 1
      %p96 = scmp.eq.s32.totalorder %s16, 6
      %p97 = scmp.ne.s32.totalorder %s92, %s94
      %p98 = scmp.eq.s32.totalorder %s16, 0
      %p99 = por %p97, %p98
      %p100 = scmp.ne.s32.totalorder %s92, %s94
      %p101 = scmp.eq.s32.totalorder %s21, 6
      %p102 = por %p100, %p101
      %p103 = scmp.ne.s32.totalorder %s94, %s95
      %p104 = scmp.eq.s32.totalorder %s21, 0
      %p105 = por %p103, %p104
      %p106 = scmp.ne.s32.totalorder %s94, %s95
      %p107 = scmp.eq.s32.totalorder %s22, 6
      %p108 = por %p106, %p107
      %p110 = scmp.ne.s32.totalorder %s95, %s109
      %p111 = scmp.eq.s32.totalorder %s22, 0
      %p112 = por %p110, %p111
      %s114 = sadd.s32 %s113, 1
      %p117 = scmp.eq.s32.totalorder %s16, 6
      %p118 = scmp.ne.s32.totalorder %s113, %s115
      %p119 = scmp.eq.s32.totalorder %s16, 0
      %p120 = por %p118, %p119
      %p121 = scmp.ne.s32.totalorder %s113, %s115
      %p122 = scmp.eq.s32.totalorder %s21, 6
      %p123 = por %p121, %p122
      %p124 = scmp.ne.s32.totalorder %s115, %s116
      %p125 = scmp.eq.s32.totalorder %s21, 0
      %p126 = por %p124, %p125
      %p127 = scmp.ne.s32.totalorder %s115, %s116
      %p128 = scmp.eq.s32.totalorder %s22, 6
      %p129 = por %p127, %p128
      %p131 = scmp.ne.s32.totalorder %s116, %s130
      %p132 = scmp.eq.s32.totalorder %s22, 0
      %p133 = por %p131, %p132
      %s135 = sadd.s32 %s134, 1
      %p138 = scmp.eq.s32.totalorder %s16, 6
      %p139 = scmp.ne.s32.totalorder %s134, %s136
      %p140 = scmp.eq.s32.totalorder %s16, 0
      %p141 = por %p139, %p140
      %p142 = scmp.ne.s32.totalorder %s134, %s136
      %p143 = scmp.eq.s32.totalorder %s21, 6
      %p144 = por %p142, %p143
      %p145 = scmp.ne.s32.totalorder %s136, %s137
      %p146 = scmp.eq.s32.totalorder %s21, 0
      %p147 = por %p145, %p146
      %p148 = scmp.ne.s32.totalorder %s136, %s137
      %p149 = scmp.eq.s32.totalorder %s22, 6
      %p150 = por %p148, %p149
      %p152 = scmp.ne.s32.totalorder %s137, %s151
      %p153 = scmp.eq.s32.totalorder %s22, 0
      %p154 = por %p152, %p153
      %s156 = sadd.s32 %s155, 1
      %p159 = scmp.eq.s32.totalorder %s16, 6
      %p160 = scmp.ne.s32.totalorder %s155, %s157
      %p161 = scmp.eq.s32.totalorder %s16, 0
      %p162 = por %p160, %p161
      %p163 = scmp.ne.s32.totalorder %s155, %s157
      %p164 = scmp.eq.s32.totalorder %s21, 6
      %p165 = por %p163, %p164
      %p166 = scmp.ne.s32.totalorder %s157, %s158
      %p167 = scmp.eq.s32.totalorder %s21, 0
      %p168 = por %p166, %p167
      %p169 = scmp.ne.s32.totalorder %s157, %s158
      %p170 = scmp.eq.s32.totalorder %s22, 6
      %p171 = por %p169, %p170
      %p173 = scmp.ne.s32.totalorder %s158, %s172
      %p174 = scmp.eq.s32.totalorder %s22, 0
      %p175 = por %p173, %p174
      %s177 = sadd.s32 %s176, 1
      %p180 = scmp.eq.s32.totalorder %s16, 6
      %p181 = scmp.ne.s32.totalorder %s176, %s178
      %p182 = scmp.eq.s32.totalorder %s16, 0
      %p183 = por %p181, %p182
      %p184 = scmp.ne.s32.totalorder %s176, %s178
      %p185 = scmp.eq.s32.totalorder %s21, 6
      %p186 = por %p184, %p185
      %p187 = scmp.ne.s32.totalorder %s178, %s179
      %p188 = scmp.eq.s32.totalorder %s21, 0
      %p189 = por %p187, %p188
      %p190 = scmp.ne.s32.totalorder %s178, %s179
      %p191 = scmp.eq.s32.totalorder %s22, 6
      %p192 = por %p190, %p191
      %p194 = scmp.ne.s32.totalorder %s179, %s193
      %p195 = scmp.eq.s32.totalorder %s22, 0
      %p196 = por %p194, %p195
      %s198 = sadd.s32 %s197, 1
      %p201 = scmp.eq.s32.totalorder %s16, 6
      %p202 = scmp.ne.s32.totalorder %s197, %s199
      %p203 = scmp.eq.s32.totalorder %s16, 0
      %p204 = por %p202, %p203
      %p205 = scmp.ne.s32.totalorder %s197, %s199
      %p206 = scmp.eq.s32.totalorder %s21, 6
      %p207 = por %p205, %p206
      %p208 = scmp.ne.s32.totalorder %s199, %s200
      %p209 = scmp.eq.s32.totalorder %s21, 0
      %p210 = por %p208, %p209
      %p211 = scmp.ne.s32.totalorder %s199, %s200
      %p212 = scmp.eq.s32.totalorder %s22, 6
      %p213 = por %p211, %p212
      %p215 = scmp.ne.s32.totalorder %s200, %s214
      %p216 = scmp.eq.s32.totalorder %s22, 0
      %p217 = por %p215, %p216
      %p218 = scmp.le.s32.totalorder 1, %s16
      %p219 = scmp.lt.s32.totalorder %s16, 8
      %p220 = pnand %p218, %p219
      %p221 = pneg %p220
      // Predicated region
      $region9: #{latent_dire_forward.4} parent=5 // pred_check
        _
      $region10: #{latent_dire_forward.4} parent=5 // pred_check_branch
        %223 = sbr.rel (%p220) target = $region12
      $region11: #{latent_dire_forward.4} parent=5 // pred_region
        %s224 = ssub.s32 %s16, 1
        // Predicated region
        $region13: #{latent_dire_forward.4} parent=11 // pred_check
          %p225 = pneg %p37
        $region14: #{latent_dire_forward.4} parent=11 // pred_check_branch
          %227 = sbr.rel (%p225) target = $region16
        $region15: #{latent_dire_forward.4} parent=11 // pred_region
          %s229 = ssub.s32 16, 16
          %230 = vsyncadd [#allocation4], %s229
          %s232 = sshll.u32 %s0, 4
          %s233 = int_to_ptr.vmem [resolvable:$true] %s232
          %235 = dma.vmem_to_smem %s233, 16, [#allocation3], [#allocation4]
        $region16: #{latent_dire_forward.4} parent=11 // pred_fallthru
          _
        // Predicated region
        $region17: #{latent_dire_forward.4} parent=11 // pred_check
          %p236 = pneg %p58
        $region18: #{latent_dire_forward.4} parent=11 // pred_check_branch
          %238 = sbr.rel (%p236) target = $region20
        $region19: #{latent_dire_forward.4} parent=11 // pred_region
          _
        $region20: #{latent_dire_forward.4} parent=11 // pred_fallthru
          _
        // Predicated region
        $region21: #{latent_dire_forward.4} parent=11 // pred_check
          %p239 = pneg %p105
        $region22: #{latent_dire_forward.4} parent=11 // pred_check_branch
          %241 = sbr.rel (%p239) target = $region24
        $region23: #{latent_dire_forward.4} parent=11 // pred_region
          _
        $region24: #{latent_dire_forward.4} parent=11 // pred_fallthru
          _
        // Predicated region
        $region25: #{latent_dire_forward.4} parent=11 // pred_check
          %p242 = pneg %p126
        $region26: #{latent_dire_forward.4} parent=11 // pred_check_branch
          %244 = sbr.rel (%p242) target = $region28
        $region27: #{latent_dire_forward.4} parent=11 // pred_region
          _
        $region28: #{latent_dire_forward.4} parent=11 // pred_fallthru
          _
        // Predicated region
        $region29: #{latent_dire_forward.4} parent=11 // pred_check
          %p245 = pneg %p147
        $region30: #{latent_dire_forward.4} parent=11 // pred_check_branch
          %247 = sbr.rel (%p245) target = $region32
        $region31: #{latent_dire_forward.4} parent=11 // pred_region
          _
        $region32: #{latent_dire_forward.4} parent=11 // pred_fallthru
          _
        // Predicated region
        $region33: #{latent_dire_forward.4} parent=11 // pred_check
          %p248 = pneg %p168
        $region34: #{latent_dire_forward.4} parent=11 // pred_check_branch
          %250 = sbr.rel (%p248) target = $region36
        $region35: #{latent_dire_forward.4} parent=11 // pred_region
          _
        $region36: #{latent_dire_forward.4} parent=11 // pred_fallthru
          _
      $region12: #{latent_dire_forward.4} parent=5 // pred_fallthru
        _
      %p251 = scmp.lt.s32.totalorder %s16, 7
      // Predicated region
      $region37: #{latent_dire_forward.4} parent=5 // pred_check
        %p252 = pneg %p251
      $region38: #{latent_dire_forward.4} parent=5 // pred_check_branch
        %254 = sbr.rel (%p252) target = $region40
      $region39: #{latent_dire_forward.4} parent=5 // pred_region
        // Predicated region
        $region41: #{latent_dire_forward.4} parent=39 // pred_check
          %p255 = pneg %p78
        $region42: #{latent_dire_forward.4} parent=39 // pred_check_branch
          %257 = sbr.rel (%p255) target = $region44
        $region43: #{latent_dire_forward.4} parent=39 // pred_region
          %p258 = scmp.lt.s32.totalorder %s16, 6
          %s259 = scalar_select %p258, %s16, 6
          %s260 = smul.addr %s259, 8
          %s261 = scalar_lea.vmem %s2, %s260
        $region44: #{latent_dire_forward.4} parent=39 // pred_fallthru
          _
      $region40: #{latent_dire_forward.4} parent=5 // pred_fallthru
        _
      %p262 = scmp.le.s32.totalorder 1, %s16
      %p263 = scmp.lt.s32.totalorder %s16, 8
      %p264 = pnand %p262, %p263
      %p265 = pneg %p264
      // Predicated region
      $region45: #{latent_dire_forward.4} parent=5 // pred_check
        _
      $region46: #{latent_dire_forward.4} parent=5 // pred_check_branch
        %267 = sbr.rel (%p264) target = $region48
      $region47: #{latent_dire_forward.4} parent=5 // pred_region
        %s268 = ssub.s32 %s16, 1
        // Predicated region
        $region49: #{latent_dire_forward.4} parent=47 // pred_check
          %p269 = pneg %p37
        $region50: #{latent_dire_forward.4} parent=47 // pred_check_branch
          %271 = sbr.rel (%p269) target = $region52
        $region51: #{latent_dire_forward.4} parent=47 // pred_region
          %272 = dma.done [#allocation4], 16
        $region52: #{latent_dire_forward.4} parent=47 // pred_fallthru
          _
        %273 = sfence
        %p274 = pneg %p37
        %p275 = pneg %p34
        %p276 = pneg %p58
        %p277 = pneg %p55
        %p278 = scmp.lt.s32.totalorder %s21, 6
        %s279 = scalar_select %p278, %s21, 6
        %s280 = smul.addr %s279, 8
        %s281 = scalar_lea.vmem %s2, %s280
        %p282 = pneg %p84
        %p283 = pneg %p81
        %p284 = pneg %p105
        %p285 = pneg %p102
        %p286 = pneg %p126
        %p287 = pneg %p123
        %p288 = pneg %p147
        %p289 = pneg %p144
        %p290 = pneg %p168
        %p291 = pneg %p165
        %p292 = pneg %p189
        %p293 = pneg %p186
        %p294 = pneg %p210
        %p295 = pneg %p207
        %p296 = scmp.lt.s32.totalorder %s21, 6
        %s297 = scalar_select %p296, %s21, 6
        %s298 = smul.addr %s297, 8
        %s299 = scalar_lea.vmem %s2, %s298
        %p301 = scmp.eq.s32.totalorder %s21, 0
        // Predicated region
        $region53: #{latent_dire_forward.4} parent=47 // pred_check
          %p302 = pneg %p301
        $region54: #{latent_dire_forward.4} parent=47 // pred_check_branch
          %304 = sbr.rel (%p302) target = $region56
        $region55: #{latent_dire_forward.4} parent=47 // pred_region
          %v305 = vld [vmem:[%s1] sm:$0xff]
          %306 = vst [vmem:[#allocation2] sm:$0xff] %v305
        $region56: #{latent_dire_forward.4} parent=47 // pred_fallthru
          _
        %v307 = vld [vmem:[#allocation2] sm:$0xff]
        %v308 = vld [vmem:[%s299] sm:$0xff]
        %v309 = vadd.f32 %v307, %v308
        %v310 = vpack.c.bf16 %v309, %v309
        %v311 = vld [vmem:[%s3] sm:$0xf]
        %v312 = vld [vmem:[%s3 + $0x4] sm:$0xf]
        %v313 = vld [vmem:[%s3 + $0x8] sm:$0xf]
        %v314 = vld [vmem:[%s3 + $0xc] sm:$0xf]
        %v315 = vld [vmem:[%s3 + $0x10] sm:$0xf]
        %v316 = vld [vmem:[%s3 + $0x14] sm:$0xf]
        %v317 = vld [vmem:[%s3 + $0x18] sm:$0xf]
        %v318 = vld [vmem:[%s3 + $0x1c] sm:$0xf]
        %v319 = vld [vmem:[%s3 + $0x20] sm:$0xf]
        %v320 = vld [vmem:[%s3 + $0x24] sm:$0xf]
        %v321 = vld [vmem:[%s3 + $0x28] sm:$0xf]
        %v322 = vld [vmem:[%s3 + $0x2c] sm:$0xf]
        %v323 = vld [vmem:[%s3 + $0x30] sm:$0xf]
        %v324 = vld [vmem:[%s3 + $0x34] sm:$0xf]
        %v325 = vld [vmem:[%s3 + $0x38] sm:$0xf]
        %v326 = vld [vmem:[%s3 + $0x3c] sm:$0xf]
        %v327 = vld [vmem:[%s4] sm:$0x1]
        %v329 = vlaneseq
        %v330 = vshrl.u32 %v329, 7
        %v331 = vsub.s32 0, %v330
        %v332 = vrot.slane %v327, %v331
        %v350 = vunpack.c.l.b16 %v311
        %v351 = vunpack.c.l.b16 %v312
        %v352 = vunpack.c.l.b16 %v313
        %v353 = vunpack.c.l.b16 %v314
        %v354 = vunpack.c.l.b16 %v315
        %v355 = vunpack.c.l.b16 %v316
        %v356 = vunpack.c.l.b16 %v317
        %v357 = vunpack.c.l.b16 %v318
        %v358 = vunpack.c.l.b16 %v319
        %v359 = vunpack.c.l.b16 %v320
        %v360 = vunpack.c.l.b16 %v321
        %v361 = vunpack.c.l.b16 %v322
        %v362 = vunpack.c.l.b16 %v323
        %v363 = vunpack.c.l.b16 %v324
        %v364 = vunpack.c.l.b16 %v325
        %v365 = vunpack.c.l.b16 %v326
        %v366 = vpack.c.b16 %v351, %v350
        %v367 = vpack.c.b16 %v353, %v352
        %v368 = vpack.c.b16 %v355, %v354
        %v369 = vpack.c.b16 %v357, %v356
        %v370 = vpack.c.b16 %v359, %v358
        %v371 = vpack.c.b16 %v361, %v360
        %v372 = vpack.c.b16 %v363, %v362
        %v373 = vpack.c.b16 %v365, %v364
        %382 = vmatprep.subr.bf16.mxu0 0
        %383 = vmatpush1.bf16.msra.mxu0 %v373
        %384 = vmatprep.subr.bf16.mxu0 0
        %385 = vmatpush1.bf16.msra.mxu0 %v372
        %386 = vmatprep.subr.bf16.mxu0 0
        %387 = vmatpush1.bf16.msra.mxu0 %v371
        %388 = vmatprep.subr.bf16.mxu0 0
        %389 = vmatpush1.bf16.msra.mxu0 %v370
        %390 = vmatprep.subr.bf16.mxu0 0
        %391 = vmatpush1.bf16.msra.mxu0 %v369
        %392 = vmatprep.subr.bf16.mxu0 0
        %393 = vmatpush1.bf16.msra.mxu0 %v368
        %394 = vmatprep.subr.bf16.mxu0 0
        %395 = vmatpush1.bf16.msra.mxu0 %v367
        %396 = vmatprep.subr.bf16.mxu0 0
        %397 = vmatpush1.bf16.msra.mxu0 %v366
        %398 = vmatprep.subr.bf16.mxu0 0
        %399 = vmatpush2.bf16.msra.mxu0 0
        %400 = vmatprep.subr.bf16.mxu0 0
        %401 = vmatpush2.bf16.msra.mxu0 0
        %402 = vmatprep.subr.bf16.mxu0 0
        %403 = vmatpush2.bf16.msra.mxu0 0
        %404 = vmatprep.subr.bf16.mxu0 0
        %405 = vmatpush2.bf16.msra.mxu0 0
        %406 = vmatprep.subr.bf16.mxu0 0
        %407 = vmatpush2.bf16.msra.mxu0 0
        %408 = vmatprep.subr.bf16.mxu0 0
        %409 = vmatpush2.bf16.msra.mxu0 0
        %410 = vmatprep.subr.bf16.mxu0 0
        %411 = vmatpush2.bf16.msra.mxu0 0
        %412 = vmatprep.subr.bf16.mxu0 0
        %413 = vmatpush2.bf16.msra.mxu0 0
        %414 = vmatprep.mubr.bf16.mxu0 0
        %415 = vmatmul.mubr.bf16.gmra.mxu0 %v310
        %v416 = vpop.f32.mrf.mxu0
        %v417 = vadd.f32 %v332, %v416
        %v418 = vpop.f32.mrf.mxu0
        %v419 = vpop.f32.mrf.mxu0
        %v420 = vpop.f32.mrf.mxu0
        %421 = vdwg.mxu0
        %v422 = vtanh.pop %v417
        %v423 = vpack.c.bf16 %v422, %v422
        %v424 = vld [vmem:[%s5] sm:$0xf]
        %v425 = vld [vmem:[%s5 + $0x4] sm:$0xf]
        %v426 = vld [vmem:[%s5 + $0x8] sm:$0xf]
        %v427 = vld [vmem:[%s5 + $0xc] sm:$0xf]
        %v428 = vld [vmem:[%s5 + $0x10] sm:$0xf]
        %v429 = vld [vmem:[%s5 + $0x14] sm:$0xf]
        %v430 = vld [vmem:[%s5 + $0x18] sm:$0xf]
        %v431 = vld [vmem:[%s5 + $0x1c] sm:$0xf]
        %v432 = vld [vmem:[%s5 + $0x20] sm:$0xf]
        %v433 = vld [vmem:[%s5 + $0x24] sm:$0xf]
        %v434 = vld [vmem:[%s5 + $0x28] sm:$0xf]
        %v435 = vld [vmem:[%s5 + $0x2c] sm:$0xf]
        %v436 = vld [vmem:[%s5 + $0x30] sm:$0xf]
        %v437 = vld [vmem:[%s5 + $0x34] sm:$0xf]
        %v438 = vld [vmem:[%s5 + $0x38] sm:$0xf]
        %v439 = vld [vmem:[%s5 + $0x3c] sm:$0xf]
        %v440 = vld [vmem:[%s6] sm:$0x1]
        %v442 = vlaneseq
        %v443 = vshrl.u32 %v442, 7
        %v444 = vsub.s32 0, %v443
        %v445 = vrot.slane %v440, %v444
        %v463 = vunpack.c.l.b16 %v424
        %v464 = vunpack.c.l.b16 %v425
        %v465 = vunpack.c.l.b16 %v426
        %v466 = vunpack.c.l.b16 %v427
        %v467 = vunpack.c.l.b16 %v428
        %v468 = vunpack.c.l.b16 %v429
        %v469 = vunpack.c.l.b16 %v430
        %v470 = vunpack.c.l.b16 %v431
        %v471 = vunpack.c.l.b16 %v432
        %v472 = vunpack.c.l.b16 %v433
        %v473 = vunpack.c.l.b16 %v434
        %v474 = vunpack.c.l.b16 %v435
        %v475 = vunpack.c.l.b16 %v436
        %v476 = vunpack.c.l.b16 %v437
        %v477 = vunpack.c.l.b16 %v438
        %v478 = vunpack.c.l.b16 %v439
        %v479 = vpack.c.b16 %v464, %v463
        %v480 = vpack.c.b16 %v466, %v465
        %v481 = vpack.c.b16 %v468, %v467
        %v482 = vpack.c.b16 %v470, %v469
        %v483 = vpack.c.b16 %v472, %v471
        %v484 = vpack.c.b16 %v474, %v473
        %v485 = vpack.c.b16 %v476, %v475
        %v486 = vpack.c.b16 %v478, %v477
        %495 = vmatprep.subr.bf16.mxu0 0
        %496 = vmatpush1.bf16.msra.mxu0 %v486
        %497 = vmatprep.subr.bf16.mxu0 0
        %498 = vmatpush1.bf16.msra.mxu0 %v485
        %499 = vmatprep.subr.bf16.mxu0 0
        %500 = vmatpush1.bf16.msra.mxu0 %v484
        %501 = vmatprep.subr.bf16.mxu0 0
        %502 = vmatpush1.bf16.msra.mxu0 %v483
        %503 = vmatprep.subr.bf16.mxu0 0
        %504 = vmatpush1.bf16.msra.mxu0 %v482
        %505 = vmatprep.subr.bf16.mxu0 0
        %506 = vmatpush1.bf16.msra.mxu0 %v481
        %507 = vmatprep.subr.bf16.mxu0 0
        %508 = vmatpush1.bf16.msra.mxu0 %v480
        %509 = vmatprep.subr.bf16.mxu0 0
        %510 = vmatpush1.bf16.msra.mxu0 %v479
        %511 = vmatprep.subr.bf16.mxu0 0
        %512 = vmatpush2.bf16.msra.mxu0 0
        %513 = vmatprep.subr.bf16.mxu0 0
        %514 = vmatpush2.bf16.msra.mxu0 0
        %515 = vmatprep.subr.bf16.mxu0 0
        %516 = vmatpush2.bf16.msra.mxu0 0
        %517 = vmatprep.subr.bf16.mxu0 0
        %518 = vmatpush2.bf16.msra.mxu0 0
        %519 = vmatprep.subr.bf16.mxu0 0
        %520 = vmatpush2.bf16.msra.mxu0 0
        %521 = vmatprep.subr.bf16.mxu0 0
        %522 = vmatpush2.bf16.msra.mxu0 0
        %523 = vmatprep.subr.bf16.mxu0 0
        %524 = vmatpush2.bf16.msra.mxu0 0
        %525 = vmatprep.subr.bf16.mxu0 0
        %526 = vmatpush2.bf16.msra.mxu0 0
        %527 = vmatprep.mubr.bf16.mxu0 0
        %528 = vmatmul.mubr.bf16.gmra.mxu0 %v423
        %v529 = vpop.f32.mrf.mxu0
        %v530 = vadd.f32 %v445, %v529
        %v531 = vpop.f32.mrf.mxu0
        %v532 = vpop.f32.mrf.mxu0
        %v533 = vpop.f32.mrf.mxu0
        %534 = vdwg.mxu0
        %s535 = smul.u32 %s21, 4
        %s536 = sld [smem:[#allocation3 + %s535]]
        %s537 = sadd.s32 %s535, 1
        %s538 = sld [smem:[#allocation3 + %s537]]
        %s539 = sadd.s32 %s535, 2
        %s540 = sld [smem:[#allocation3 + %s539]]
        %s541 = sadd.s32 %s535, 3
        %s542 = sld [smem:[#allocation3 + %s541]]
        %v543 = vstv %s538
        %v544 = vmul.f32 %v543, %v530
        %v545 = vsub.f32 %v307, %v544
        %v546 = vstv %s536
        %v547 = vmul.f32 %v545, %v546
        %v548 = vstv %s540
        %v549 = vmul.f32 %v548, %v547
        %v550 = vstv %s542
        %v551 = vmul.f32 %v550, %v530
        %v552 = vadd.f32 %v549, %v551
        %553 = vst [vmem:[#allocation2] sm:$0xff] %v552
        %p554 = scmp.eq.s32.totalorder %s21, 6
        // Predicated region
        $region57: #{latent_dire_forward.4} parent=47 // pred_check
          %p555 = pneg %p554
        $region58: #{latent_dire_forward.4} parent=47 // pred_check_branch
          %557 = sbr.rel (%p555) target = $region60
        $region59: #{latent_dire_forward.4} parent=47 // pred_region
          %558 = vst [vmem:[%s7] sm:$0xff] %v552
          %v559 = vld [vmem:[%s1] sm:$0xff]
          %v560 = vsub.f32 %v559, %v552
          %v561 = vand.u32 2147483647, %v560
          %562 = vst [vmem:[%s8] sm:$0xff] %v561
        $region60: #{latent_dire_forward.4} parent=47 // pred_fallthru
          _
        // Predicated region
        $region61: #{latent_dire_forward.4} parent=47 // pred_check
          %p563 = pneg %p186
        $region62: #{latent_dire_forward.4} parent=47 // pred_check_branch
          %565 = sbr.rel (%p563) target = $region64
        $region63: #{latent_dire_forward.4} parent=47 // pred_region
          _
        $region64: #{latent_dire_forward.4} parent=47 // pred_fallthru
          _
        // Predicated region
        $region65: #{latent_dire_forward.4} parent=47 // pred_check
          %p566 = pneg %p207
        $region66: #{latent_dire_forward.4} parent=47 // pred_check_branch
          %568 = sbr.rel (%p566) target = $region68
        $region67: #{latent_dire_forward.4} parent=47 // pred_region
          _
        $region68: #{latent_dire_forward.4} parent=47 // pred_fallthru
          _
        // Predicated region
        $region69: #{latent_dire_forward.4} parent=47 // pred_check
          %p569 = pneg %p186
        $region70: #{latent_dire_forward.4} parent=47 // pred_check_branch
          %571 = sbr.rel (%p569) target = $region72
        $region71: #{latent_dire_forward.4} parent=47 // pred_region
          _
        $region72: #{latent_dire_forward.4} parent=47 // pred_fallthru
          _
        // Predicated region
        $region73: #{latent_dire_forward.4} parent=47 // pred_check
          %p572 = pneg %p207
        $region74: #{latent_dire_forward.4} parent=47 // pred_check_branch
          %574 = sbr.rel (%p572) target = $region76
        $region75: #{latent_dire_forward.4} parent=47 // pred_region
          _
        $region76: #{latent_dire_forward.4} parent=47 // pred_fallthru
          _
      $region48: #{latent_dire_forward.4} parent=5 // pred_fallthru
        _
      %p575 = scmp.le.s32.totalorder 2, %s16
      // Predicated region
      $region77: #{latent_dire_forward.4} parent=5 // pred_check
        %p576 = pneg %p575
      $region78: #{latent_dire_forward.4} parent=5 // pred_check_branch
        %578 = sbr.rel (%p576) target = $region80
      $region79: #{latent_dire_forward.4} parent=5 // pred_region
        %s579 = ssub.s32 %s16, 2
      $region80: #{latent_dire_forward.4} parent=5 // pred_fallthru
        _
    $region6: #{latent_dire_forward.4} parent=1 // loop_footer
      %s20 = sadd.s32 1, %s16
    $region7: #{latent_dire_forward.4} parent=1 // loop_footer_branch
      %15 = sbr.rel target = $region3
    $region8: #{latent_dire_forward.4} parent=1 // loop_exit
      _
    %580 = vsyncpa [#allocation4], 1
    %s581 = scalar_lea.sflag [#allocation4], 1
    %582 = vsyncpa %s581, 1

// kernel: latent_dire_forward.5
$region0: #{latent_dire_forward.5}
  #allocation0 [shape = 'u32[]', space=smem, size = 0x4, offset = 0x4, fixed_abs, tag = 'smem constant byte address 0x4 - core index']
  #allocation1 [shape = 'u32[144,128]{1,0:T(1,128)}', space=vmem, size = 0x12000, scoped, tag = 'internal scratch']
  %s0 = inlined_call_operand.vmem [shape: f32[32,4], index: 0, kind: input, shape index: {}]
  %s1 = inlined_call_operand.vmem [shape: f32[4,256], index: 1, kind: input, shape index: {}]
  %s2 = inlined_call_operand.vmem [shape: f32[1,256], index: 2, kind: input, shape index: {}]
  %s3 = inlined_call_operand.vmem [shape: f32[32,256], index: 3, kind: input, shape index: {}]
  %s4 = inlined_call_operand.vmem [shape: f32[32,256], index: 4, kind: output, shape index: {0}]
  %s5 = inlined_call_operand.vmem [shape: f32[32,256], index: 5, kind: output, shape index: {1}]
  %6 = xla_tuple %s4, %s5
  %s7 = sld [smem:[#allocation0]]
  $region34: #{latent_dire_forward.5} parent=0
    _
  %s9 = ssub.s32 1, %s7
  %s10 = scalar_select 0, %s9, %s7
  // Predicated region
  $region2: #{latent_dire_forward.5} parent=0 // pred_check
    _
  $region3: #{latent_dire_forward.5} parent=0 // pred_check_branch
    %12 = sbr.rel (0) target = $region5
  $region4: #{latent_dire_forward.5} parent=0 // pred_region
    _
  $region5: #{latent_dire_forward.5} parent=0 // pred_fallthru
    _
  // Predicated region
  $region6: #{latent_dire_forward.5} parent=0 // pred_check
    _
  $region7: #{latent_dire_forward.5} parent=0 // pred_check_branch
    %14 = sbr.rel (0) target = $region9
  $region8: #{latent_dire_forward.5} parent=0 // pred_region
    _
  $region9: #{latent_dire_forward.5} parent=0 // pred_fallthru
    _
  // Predicated region
  $region10: #{latent_dire_forward.5} parent=0 // pred_check
    _
  $region11: #{latent_dire_forward.5} parent=0 // pred_check_branch
    %16 = sbr.rel (0) target = $region13
  $region12: #{latent_dire_forward.5} parent=0 // pred_region
    _
  $region13: #{latent_dire_forward.5} parent=0 // pred_fallthru
    _
  // Predicated region
  $region14: #{latent_dire_forward.5} parent=0 // pred_check
    _
  $region15: #{latent_dire_forward.5} parent=0 // pred_check_branch
    %18 = sbr.rel (0) target = $region17
  $region16: #{latent_dire_forward.5} parent=0 // pred_region
    _
  $region17: #{latent_dire_forward.5} parent=0 // pred_fallthru
    _
  %v19 = vld [vmem:[%s0] sm:$0xff]
  %v20 = vld [vmem:[%s0 + $0x8] sm:$0xff]
  %v21 = vld [vmem:[%s0 + $0x10] sm:$0xff]
  %v22 = vld [vmem:[%s0 + $0x18] sm:$0xff]
  %v23 = vld [vmem:[%s1] sm:$0xff]
  %v24 = vld [vmem:[%s2] sm:$0x3]
  %v26 = vlaneseq
  %v27 = vshrl.u32 %v26, 7
  %v28 = vsub.s32 0, %v27
  %v29 = vrot.slane %v24, %v28
  %v30 = vlaneseq
  %v31 = vshrl.u32 %v30, 7
  %v32 = vsub.s32 1, %v31
  %v33 = vrot.slane %v24, %v32
  %v37 = vcombine.high %v23, %v23
  %vm38 = vcmask 31744
  %v40 = vsel %vm38, %v19, 0
  %v43 = vsel %vm38, %v20, 0
  %v46 = vsel %vm38, %v21, 0
  %v49 = vsel %vm38, %v22, 0
  %vm51 = vcmask 1043456
  %v52 = vsel %vm51, %v23, 0
  %v54 = vsel %vm51, %v37, 0
  %56 = vmatprep.subr.mxu0 0.0
  %57 = vmatpush1.msra.mxu0 0.0
  %58 = vmatprep.subr.mxu0 0.0
  %59 = vmatpush1.msra.mxu0 0.0
  %60 = vmatprep.subr.mxu0 0.0
  %61 = vmatpush1.msra.mxu0 0.0
  %62 = vmatprep.subr.mxu0 0.0
  %63 = vmatpush1.msra.mxu0 0.0
  %64 = vmatprep.subr.mxu0 0.0
  %65 = vmatpush1.msra.mxu0 0.0
  %66 = vmatprep.subr.mxu0 0.0
  %67 = vmatpush1.msra.mxu0 0.0
  %68 = vmatprep.subr.mxu0 0.0
  %69 = vmatpush1.msra.mxu0 0.0
  %70 = vmatprep.subr.mxu0 0.0
  %71 = vmatpush1.msra.mxu0 0.0
  %72 = vmatprep.subr.mxu0 0.0
  %73 = vmatpush1.msra.mxu0 0.0
  %74 = vmatprep.subr.mxu0 0.0
  %75 = vmatpush1.msra.mxu0 0.0
  %76 = vmatprep.subr.mxu0 0.0
  %77 = vmatpush1.msra.mxu0 0.0
  %78 = vmatprep.subr.mxu0 0.0
  %79 = vmatpush1.msra.mxu0 0.0
  %80 = vmatprep.subr.mxu0 0.0
  %81 = vmatpush1.msra.mxu0 0.0
  %82 = vmatprep.subr.mxu0 0.0
  %83 = vmatpush1.msra.mxu0 0.0
  %84 = vmatprep.subr.mxu0 0.0
  %85 = vmatpush1.msra.mxu0 0.0
  %86 = vmatprep.subr.mxu0 %v54
  %87 = vmatpush1.msra.mxu0 %v52
  %88 = vmatprep.subr.mxu0 0.0
  %89 = vmatpush2.msra.mxu0 0.0
  %90 = vmatprep.subr.mxu0 0.0
  %91 = vmatpush2.msra.mxu0 0.0
  %92 = vmatprep.subr.mxu0 0.0
  %93 = vmatpush2.msra.mxu0 0.0
  %94 = vmatprep.subr.mxu0 0.0
  %95 = vmatpush2.msra.mxu0 0.0
  %96 = vmatprep.subr.mxu0 0.0
  %97 = vmatpush2.msra.mxu0 0.0
  %98 = vmatprep.subr.mxu0 0.0
  %99 = vmatpush2.msra.mxu0 0.0
  %100 = vmatprep.subr.mxu0 0.0
  %101 = vmatpush2.msra.mxu0 0.0
  %102 = vmatprep.subr.mxu0 0.0
  %103 = vmatpush2.msra.mxu0 0.0
  %104 = vmatprep.subr.mxu0 0.0
  %105 = vmatpush2.msra.mxu0 0.0
  %106 = vmatprep.subr.mxu0 0.0
  %107 = vmatpush2.msra.mxu0 0.0
  %108 = vmatprep.subr.mxu0 0.0
  %109 = vmatpush2.msra.mxu0 0.0
  %110 = vmatprep.subr.mxu0 0.0
  %111 = vmatpush2.msra.mxu0 0.0
  %112 = vmatprep.subr.mxu0 0.0
  %113 = vmatpush2.msra.mxu0 0.0
  %114 = vmatprep.subr.mxu0 0.0
  %115 = vmatpush2.msra.mxu0 0.0
  %116 = vmatprep.subr.mxu0 0.0
  %117 = vmatpush2.msra.mxu0 0.0
  %118 = vmatprep.subr.mxu0 0.0
  %119 = vmatpush2.msra.mxu0 0.0
  %120 = vmatprep.mubr.f32.mxu0 0.0
  %121 = vmatmul.mubr.f32.gmra.mxu0 %v40
  %v122 = vpop.f32.mrf.mxu0
  %v123 = vadd.f32 %v29, %v122
  %v124 = vpop.f32.mrf.mxu0
  %v125 = vadd.f32 %v33, %v124
  %126 = vmatprep.mubr.f32.mxu0 0.0
  %127 = vmatmul.mubr.f32.gmra.mxu0 %v43
  %v128 = vpop.f32.mrf.mxu0
  %v129 = vadd.f32 %v29, %v128
  %v130 = vpop.f32.mrf.mxu0
  %v131 = vadd.f32 %v33, %v130
  %132 = vmatprep.mubr.f32.mxu0 0.0
  %133 = vmatmul.mubr.f32.gmra.mxu0 %v46
  %v134 = vpop.f32.mrf.mxu0
  %v135 = vadd.f32 %v29, %v134
  %v136 = vpop.f32.mrf.mxu0
  %v137 = vadd.f32 %v33, %v136
  %138 = vmatprep.mubr.f32.mxu0 0.0
  %139 = vmatmul.mubr.f32.gmra.mxu0 %v49
  %v140 = vpop.f32.mrf.mxu0
  %v141 = vadd.f32 %v29, %v140
  %v142 = vpop.f32.mrf.mxu0
  %v143 = vadd.f32 %v33, %v142
  %144 = vdwg.mxu0
  %v145 = vtanh.pop %v123
  %v146 = vtanh.pop %v125
  %v147 = vtanh.pop %v129
  %v148 = vtanh.pop %v131
  %v149 = vtanh.pop %v135
  %v150 = vtanh.pop %v137
  %v151 = vtanh.pop %v141
  %v152 = vtanh.pop %v143
  %153 = vst [vmem:[%s4] sm:$0xff] %v145
  %154 = vst [vmem:[%s4 + $0x8] sm:$0xff] %v146
  %155 = vst [vmem:[%s4 + $0x10] sm:$0xff] %v147
  %156 = vst [vmem:[%s4 + $0x18] sm:$0xff] %v148
  %157 = vst [vmem:[%s4 + $0x20] sm:$0xff] %v149
  %158 = vst [vmem:[%s4 + $0x28] sm:$0xff] %v150
  %159 = vst [vmem:[%s4 + $0x30] sm:$0xff] %v151
  %160 = vst [vmem:[%s4 + $0x38] sm:$0xff] %v152
  %v161 = vld [vmem:[%s3] sm:$0xff]
  %v162 = vld [vmem:[%s3 + $0x8] sm:$0xff]
  %v163 = vld [vmem:[%s3 + $0x10] sm:$0xff]
  %v164 = vld [vmem:[%s3 + $0x18] sm:$0xff]
  %v165 = vld [vmem:[%s3 + $0x20] sm:$0xff]
  %v166 = vld [vmem:[%s3 + $0x28] sm:$0xff]
  %v167 = vld [vmem:[%s3 + $0x30] sm:$0xff]
  %v168 = vld [vmem:[%s3 + $0x38] sm:$0xff]
  %v169 = vsub.f32 %v161, %v145
  %v170 = vsub.f32 %v162, %v146
  %v171 = vsub.f32 %v163, %v147
  %v172 = vsub.f32 %v164, %v148
  %v173 = vsub.f32 %v165, %v149
  %v174 = vsub.f32 %v166, %v150
  %v175 = vsub.f32 %v167, %v151
  %v176 = vsub.f32 %v168, %v152
  %v177 = vand.u32 2147483647, %v169
  %v178 = vand.u32 2147483647, %v170
  %v179 = vand.u32 2147483647, %v171
  %v180 = vand.u32 2147483647, %v172
  %v181 = vand.u32 2147483647, %v173
  %v182 = vand.u32 2147483647, %v174
  %v183 = vand.u32 2147483647, %v175
  %v184 = vand.u32 2147483647, %v176
  %185 = vst [vmem:[%s5] sm:$0xff] %v177
  %186 = vst [vmem:[%s5 + $0x8] sm:$0xff] %v178
  %187 = vst [vmem:[%s5 + $0x10] sm:$0xff] %v179
  %188 = vst [vmem:[%s5 + $0x18] sm:$0xff] %v180
  %189 = vst [vmem:[%s5 + $0x20] sm:$0xff] %v181
  %190 = vst [vmem:[%s5 + $0x28] sm:$0xff] %v182
  %191 = vst [vmem:[%s5 + $0x30] sm:$0xff] %v183
  %192 = vst [vmem:[%s5 + $0x38] sm:$0xff] %v184
  // Predicated region
  $region18: #{latent_dire_forward.5} parent=0 // pred_check
    _
  $region19: #{latent_dire_forward.5} parent=0 // pred_check_branch
    %194 = sbr.rel (0) target = $region21
  $region20: #{latent_dire_forward.5} parent=0 // pred_region
    _
  $region21: #{latent_dire_forward.5} parent=0 // pred_fallthru
    _
  // Predicated region
  $region22: #{latent_dire_forward.5} parent=0 // pred_check
    _
  $region23: #{latent_dire_forward.5} parent=0 // pred_check_branch
    %196 = sbr.rel (0) target = $region25
  $region24: #{latent_dire_forward.5} parent=0 // pred_region
    _
  $region25: #{latent_dire_forward.5} parent=0 // pred_fallthru
    _
  // Predicated region
  $region26: #{latent_dire_forward.5} parent=0 // pred_check
    _
  $region27: #{latent_dire_forward.5} parent=0 // pred_check_branch
    %198 = sbr.rel (0) target = $region29
  $region28: #{latent_dire_forward.5} parent=0 // pred_region
    _
  $region29: #{latent_dire_forward.5} parent=0 // pred_fallthru
    _
  // Predicated region
  $region30: #{latent_dire_forward.5} parent=0 // pred_check
    _
  $region31: #{latent_dire_forward.5} parent=0 // pred_check_branch
    %200 = sbr.rel (0) target = $region33
  $region32: #{latent_dire_forward.5} parent=0 // pred_region
    _
  $region33: #{latent_dire_forward.5} parent=0 // pred_fallthru
    _

</llo_original>
